<compile_context>
chip_gen: v7x
topology: tpu7x:2x2x1
jax: 0.10.0
libtpu: 0.0.40
codegen_flags: <defaults>
</compile_context>

<pallas_src>
import jax
import jax.numpy as jnp
from jax import lax
from jax.experimental import pallas as pl
from jax.experimental.pallas import tpu as pltpu

# constants.* from the original repo (chosen small & deterministic here)
EMBED_DIMENSION = 32
EMBED_MAX_NORM = 1.0
VOCAB_SIZE = 256
BATCH_SIZE = 2
SEQ_LEN = 8

# Grid-collapse threshold: below this, the full (E, V) bf16 weight slab
# (<= 512 KB) plus the (N, V) f32 logits (<= 512 KB) sit comfortably in VMEM,
# so a single grid step avoids all per-step pipeline overhead.
COLLAPSE_MAX_V = 8192
# Streaming tile menu for large V (lane-dense, widest first).
STREAM_TVS = (16384, 8192, 4096, 2048, 1024, 512, 256, 128)


def skipgram_kernel(emb_ref, w_ref, b_ref, out_ref):
    # emb_ref: (N, E)  f32 gathered embedding rows (resident across the grid)
    # w_ref  : (E, TV) bf16 lane-dense slice of the cached pre-transposed weight
    # b_ref  : (1, TV) f32 bias slice
    # out_ref: (N, TV) logits slice
    x = emb_ref[...]                                        # (N, E) f32
    # nn.Embedding(max_norm=...): rescale rows whose L2 norm exceeds max_norm.
    # One rsqrt (EUP) + a few VPU ops on a (16, 32) tile.  Recomputed every
    # grid step on purpose: it is negligible filler under the weight-tile DMA,
    # and a pl.when(pid==0)+scratch hoist would break under a "parallel"
    # (megacore) split where the second core never runs step 0.
    sq = jnp.sum(x * x, axis=-1, keepdims=True)             # (N, 1)
    scale = jnp.where(sq > EMBED_MAX_NORM * EMBED_MAX_NORM,
                      EMBED_MAX_NORM * lax.rsqrt(sq),
                      jnp.ones_like(sq))
    xs = (x * scale).astype(jnp.bfloat16)                   # downcast only at the MXU input
    # MXU-native (M, K) x (K, N) with a lane-dense RHS; f32 accumulation.
    acc = jnp.dot(xs, w_ref[...], preferred_element_type=jnp.float32)
    out_ref[...] = (acc + b_ref[...]).astype(out_ref.dtype)


def prepare_linear_params(w, b):
    """One-time init: cache the Linear weight pre-transposed to (E, V) bf16.

    Doing the cast + transpose once here (instead of per forward) removes a
    full read+write XLA pass over the weights from every call; the kernel
    then streams exactly 2*V*E bytes of weight per forward.
    """
    w_t_bf16 = jnp.asarray(w.T, dtype=jnp.bfloat16)          # (E, V)
    b2 = jnp.asarray(b, dtype=jnp.float32).reshape(1, -1)    # (1, V)
    return w_t_bf16, b2


def _choose_tv(vocab_size: int) -> int:
    if vocab_size <= COLLAPSE_MAX_V:
        return vocab_size                                    # collapse the grid
    for tv in STREAM_TVS:
        # keep >= 2 grid steps so the "parallel" axis gives both v7x
        # TensorCores a share of the tile stream
        if vocab_size % tv == 0 and vocab_size // tv >= 2:
            return tv
    raise ValueError(
        f"vocab_size > {COLLAPSE_MAX_V} must be a multiple of 128")


def skipgram_forward(ids, emb_table, w_t_bf16, b2, *, out_dtype=jnp.float32):
    """ids: (B, S) int32; emb_table: (V, E) f32; w_t_bf16: (E, V) bf16 (cached
    via prepare_linear_params); b2: (1, V) f32.  Returns (B, V, S) logits."""
    B, S = ids.shape
    E, V = w_t_bf16.shape
    N = B * S
    TV = _choose_tv(V)

    # glue: embedding row gather (pure indexing; at N = B*S = 16 rows of
    # 128 bytes each, a fused in-kernel DMA gather is not worth the overhead).
    gathered = jnp.take(emb_table, ids.reshape(-1), axis=0).astype(jnp.float32)  # (N, E)

    # TODO(synk): if the consumer tolerates bf16 logits, pass
    # out_dtype=jnp.bfloat16 to halve the output writeback stream.
    out = pl.pallas_call(
        skipgram_kernel,
        out_shape=jax.ShapeDtypeStruct((N, V), out_dtype),
        grid_spec=pltpu.PrefetchScalarGridSpec(
            num_scalar_prefetch=0,
            grid=(V // TV,),                                 # == (1,) at these constants
            in_specs=[
                pl.BlockSpec((N, E), lambda j: (0, 0)),      # embeddings: resident
                pl.BlockSpec((E, TV), lambda j: (0, j)),     # lane-dense weight tile
                pl.BlockSpec((1, TV), lambda j: (0, j)),     # bias tile
            ],
            out_specs=pl.BlockSpec((N, TV), lambda j: (0, j)),
        ),
        compiler_params=pltpu.CompilerParams(
            dimension_semantics=("parallel",)),              # v7x: both TCs share the tile stream
    )(gathered, w_t_bf16, b2)

    logits = out.reshape(B, S, V)
    # Module contract: return x.transpose(1, 2) -> (B, V, S).
    # TODO(synk): drop this transpose if downstream can consume (B, S, V); at
    # large V it is a second full HBM pass over the logits into a lane-sparse
    # (S=8) destination layout and can exceed the entire bf16 weight stream.
    # Do NOT fold it into the kernel as a (TV, N) out-block (N=16 lanes would
    # hit the masked-vst penalty); the current out_spec is already lane-dense.
    return jnp.transpose(logits, (0, 2, 1))


def reference_forward(ids, emb_table, w, b):
    # Pure-JAX f32 reference of the torch forward pass.
    x = jnp.take(emb_table, ids.reshape(-1), axis=0)
    norm = jnp.sqrt(jnp.sum(x * x, axis=-1, keepdims=True))
    scale = jnp.where(norm > EMBED_MAX_NORM, EMBED_MAX_NORM / (norm + 1e-7), 1.0)
    x = x * scale
    out = x @ w.T + b[None, :]
    out = out.reshape(ids.shape[0], ids.shape[1], -1)
    return jnp.transpose(out, (0, 2, 1))


if __name__ == "__main__":
    key = jax.random.PRNGKey(0)
    k_emb, k_w, k_b, k_ids = jax.random.split(key, 4)

    # deterministic parameter init (matching nn.Embedding / nn.Linear defaults)
    emb_table = jax.random.normal(k_emb, (VOCAB_SIZE, EMBED_DIMENSION), jnp.float32)
    bound = 1.0 / (EMBED_DIMENSION ** 0.5)
    w = jax.random.uniform(k_w, (VOCAB_SIZE, EMBED_DIMENSION), jnp.float32,
                           minval=-bound, maxval=bound)
    b = jax.random.uniform(k_b, (VOCAB_SIZE,), jnp.float32,
                           minval=-bound, maxval=bound)

    ids = jax.random.randint(k_ids, (BATCH_SIZE, SEQ_LEN), 0, VOCAB_SIZE, jnp.int32)

    # One-time parameter prep (cached bf16, pre-transposed weight).
    w_t_bf16, b2 = prepare_linear_params(w, b)
    w_t_bf16, b2 = jax.block_until_ready((w_t_bf16, b2))

    out = skipgram_forward(ids, emb_table, w_t_bf16, b2)
    out = jax.block_until_ready(out)

    ref = reference_forward(ids, emb_table, w, b)
    assert out.shape == (BATCH_SIZE, VOCAB_SIZE, SEQ_LEN), out.shape
    # bf16 weight/activation stream on the MXU vs f32 reference: tolerance
    # covers the ~1e-3-scale rounding at E=32 contraction length with margin.
    assert jnp.allclose(out, ref, atol=5e-3, rtol=5e-3), "mismatch vs reference"

    print("KERNEL_OK")
</pallas_src>

<mosaic_0001>
module attributes {stable_mosaic.version = 11 : i64} {
  func.func @skipgram_kernel(%arg0: i32, %arg1: memref<16x32xf32, #tpu.memory_space<vmem>>, %arg2: memref<32x256xbf16, #tpu.memory_space<vmem>>, %arg3: memref<1x256xf32, #tpu.memory_space<vmem>>, %arg4: memref<16x256xf32, #tpu.memory_space<vmem>>) attributes {dimension_semantics = [#tpu.dimension_semantics<parallel>], iteration_bounds = array<i64: 1>, scalar_prefetch = 0 : i64, scratch_operands = 0 : i64, tpu.core_type = #tpu.core_type<tc>, window_params = [{pipeline_mode = #tpu.pipeline_mode<synchronous>, transform_indices = @transform_0, window_bounds = array<i64: 16, 32>}, {transform_indices = @transform_1, window_bounds = array<i64: 32, 256>}, {transform_indices = @transform_2, window_bounds = array<i64: 1, 256>}, {transform_indices = @transform_3, window_bounds = array<i64: 16, 256>}]} {
    %c0 = arith.constant 0 : index
    %c0_0 = arith.constant 0 : index
    %0 = vector.load %arg1[%c0, %c0_0] : memref<16x32xf32, #tpu.memory_space<vmem>>, vector<16x32xf32>
    %1 = arith.mulf %0, %0 : vector<16x32xf32>
    %cst = arith.constant dense<0.000000e+00> : vector<16xf32>
    %2 = vector.multi_reduction <add>, %1, %cst [1] : vector<16x32xf32> to vector<16xf32>
    %3 = vector.shape_cast %2 : vector<16xf32> to vector<16x1xf32>
    %cst_1 = arith.constant 1.000000e+00 : f32
    %4 = vector.broadcast %cst_1 : f32 to vector<16x1xf32>
    %5 = arith.cmpf ogt, %3, %4 : vector<16x1xf32>
    %6 = math.rsqrt %3 : vector<16x1xf32>
    %cst_2 = arith.constant 1.000000e+00 : f32
    %7 = vector.broadcast %cst_2 : f32 to vector<16x1xf32>
    %8 = arith.mulf %7, %6 : vector<16x1xf32>
    %cst_3 = arith.constant 1.000000e+00 : f32
    %9 = vector.broadcast %cst_3 : f32 to vector<16x1xf32>
    %10 = arith.select %5, %8, %9 : vector<16x1xi1>, vector<16x1xf32>
    %11 = vector.broadcast %10 : vector<16x1xf32> to vector<16x32xf32>
    %12 = arith.mulf %0, %11 : vector<16x32xf32>
    %13 = arith.truncf %12 : vector<16x32xf32> to vector<16x32xbf16>
    %c0_4 = arith.constant 0 : index
    %c0_5 = arith.constant 0 : index
    %14 = vector.load %arg2[%c0_4, %c0_5] : memref<32x256xbf16, #tpu.memory_space<vmem>>, vector<32x256xbf16>
    %cst_6 = arith.constant dense<0.000000e+00> : vector<16x256xf32>
    %15 = tpu.matmul %13, %14, %cst_6 {dimension_numbers = #tpu.dot_dimension_numbers<[1], [0], [0], [1], [0, 0, 1, 1], [], []>} : vector<16x32xbf16>, vector<32x256xbf16>, vector<16x256xf32> -> vector<16x256xf32>
    %c0_7 = arith.constant 0 : index
    %c0_8 = arith.constant 0 : index
    %16 = vector.load %arg3[%c0_7, %c0_8] : memref<1x256xf32, #tpu.memory_space<vmem>>, vector<1x256xf32>
    %17 = vector.broadcast %16 : vector<1x256xf32> to vector<16x256xf32>
    %18 = arith.addf %15, %17 : vector<16x256xf32>
    %c0_9 = arith.constant 0 : index
    %c0_10 = arith.constant 0 : index
    %19 = vector.load %arg4[%c0_9, %c0_10] : memref<16x256xf32, #tpu.memory_space<vmem>>, vector<16x256xf32>
    tpu.vector_store %arg4[%c0_9, %c0_10], %18 {strides = array<i32>} : memref<16x256xf32, #tpu.memory_space<vmem>>, vector<16x256xf32>,
    return
  }
  func.func @transform_0(%arg0: i32) -> (i32, i32) {
    %c0_i32 = arith.constant 0 : i32
    %c0_i32_0 = arith.constant 0 : i32
    %c0_i32_1 = arith.constant 0 : i32
    return %c0_i32, %c0_i32_0 : i32, i32
  }
  func.func @transform_1(%arg0: i32) -> (i32, i32) {
    %c0_i32 = arith.constant 0 : i32
    %c0_i32_0 = arith.constant 0 : i32
    return %c0_i32, %arg0 : i32, i32
  }
  func.func @transform_2(%arg0: i32) -> (i32, i32) {
    %c0_i32 = arith.constant 0 : i32
    %c0_i32_0 = arith.constant 0 : i32
    return %c0_i32, %arg0 : i32, i32
  }
  func.func @transform_3(%arg0: i32) -> (i32, i32) {
    %c0_i32 = arith.constant 0 : i32
    %c0_i32_0 = arith.constant 0 : i32
    return %c0_i32, %arg0 : i32, i32
  }
}

</mosaic_0001>

<llo_original>
// kernel: tpu_custom_call.1
$region0: #{tpu_custom_call.1}
  #allocation0 [shape = 'u32[]', space=smem, size = 0x4, offset = 0x4, fixed_abs, tag = 'smem constant byte address 0x4 - core index']
  #allocation1 [shape = 'u32[144,128]{1,0:T(1,128)}', space=vmem, size = 0x12000, scoped, tag = 'internal scratch']
  %s0 = inlined_call_operand.hbm [shape: f32[16,32], index: 0, kind: input, shape index: {}]
  %s1 = inlined_call_operand.hbm [shape: bf16[32,256], index: 1, kind: input, shape index: {}]
  %s2 = inlined_call_operand.vmem [shape: f32[1,256], index: 2, kind: input, shape index: {}]
  %s3 = inlined_call_operand.hbm [shape: f32[16,256], index: 3, kind: output, shape index: {}]
  %s4 = sld [smem:[#allocation0]]
  $region30: #{tpu_custom_call.1} parent=0
    _
  %s6 = ssub.s32 1, %s4
  %s7 = scalar_select 0, %s6, %s4
  $region1: #{tpu_custom_call.1} parent=0
    #allocation2 [shape = 'u8[8192]{0}', space=vmem, size = 0x2000, scoped, tag = 'input window, operand 0, single buffered']
    #allocation3 [shape = 's32[1]{0}', space=sflag, size = 0x4, scoped, tag = 'scoped memory for tpu_custom_call.1']
    #allocation4 [shape = 's32[1]{0}', space=sflag, size = 0x4, scoped, tag = 'scoped memory for tpu_custom_call.1']
    #allocation5 [shape = 'u8[16384]{0}', space=vmem, size = 0x4000, scoped, tag = 'input window, operand 1, single buffered']
    #allocation6 [shape = 's32[1]{0}', space=sflag, size = 0x4, scoped, tag = 'scoped memory for tpu_custom_call.1']
    #allocation7 [shape = 'u8[16384]{0}', space=vmem, size = 0x4000, scoped, tag = 'output window, operand 0, single buffered']
    %8 = vsyncpa [#allocation3], 0
    %9 = vsyncpa [#allocation6], 0
    %10 = vsyncpa [#allocation4], 0
    // Predicated region
    $region2: #{tpu_custom_call.1} parent=1 // pred_check
      _
    $region3: #{tpu_custom_call.1} parent=1 // pred_check_branch
      %12 = sbr.rel (0) target = $region5
    $region4: #{tpu_custom_call.1} parent=1 // pred_region
      %s14 = ssub.s32 256, 256
      %15 = vsyncadd [#allocation3], %s14
      %s16 = sshll.u32 [#allocation2], 4
      %s17 = int_to_ptr.vmem [resolvable:$true] %s16
      %22 = dma.hbm_to_vmem [thread:$0]  %s0, 256, %s17, [#allocation3], 128, 128, 8
    $region5: #{tpu_custom_call.1} parent=1 // pred_fallthru
      _
    // Predicated region
    $region6: #{tpu_custom_call.1} parent=1 // pred_check
      _
    $region7: #{tpu_custom_call.1} parent=1 // pred_check_branch
      %24 = sbr.rel (0) target = $region9
    $region8: #{tpu_custom_call.1} parent=1 // pred_region
      %s26 = ssub.s32 512, 512
      %27 = vsyncadd [#allocation6], %s26
      %s28 = sshll.u32 [#allocation5], 4
      %s29 = int_to_ptr.vmem [resolvable:$true] %s28
      %34 = dma.hbm_to_vmem [thread:$0]  %s1, 512, %s29, [#allocation6], 128, 128, 8
    $region9: #{tpu_custom_call.1} parent=1 // pred_fallthru
      _
    // Predicated region
    $region10: #{tpu_custom_call.1} parent=1 // pred_check
      _
    $region11: #{tpu_custom_call.1} parent=1 // pred_check_branch
      %36 = sbr.rel (0) target = $region13
    $region12: #{tpu_custom_call.1} parent=1 // pred_region
      _
    $region13: #{tpu_custom_call.1} parent=1 // pred_fallthru
      _
    // Predicated region
    $region14: #{tpu_custom_call.1} parent=1 // pred_check
      _
    $region15: #{tpu_custom_call.1} parent=1 // pred_check_branch
      %38 = sbr.rel (0) target = $region17
    $region16: #{tpu_custom_call.1} parent=1 // pred_region
      %39 = dma.done [#allocation3], 256
    $region17: #{tpu_custom_call.1} parent=1 // pred_fallthru
      _
    // Predicated region
    $region18: #{tpu_custom_call.1} parent=1 // pred_check
      _
    $region19: #{tpu_custom_call.1} parent=1 // pred_check_branch
      %41 = sbr.rel (0) target = $region21
    $region20: #{tpu_custom_call.1} parent=1 // pred_region
      %42 = dma.done [#allocation6], 512
    $region21: #{tpu_custom_call.1} parent=1 // pred_fallthru
      _
    %v44 = vld [vmem:[#allocation2] sm:$0xff]
    %v45 = vld [vmem:[#allocation2 + $0x8] sm:$0xff]
    %v46 = vmul.f32 %v44, %v44
    %v47 = vmul.f32 %v45, %v45
    %vm48 = vcmask 261120
    %v49 = vsel %vm48, %v46, 0.0
    %50 = vadd.xlane.f32.xlu0 %v49
    %v51 = vpop.xlane.xlu0 %50
    %v52 = vsel %vm48, %v47, 0.0
    %53 = vadd.xlane.f32.xlu0 %v52
    %v54 = vpop.xlane.xlu0 %53
    %vm55 = vcmp.gt.f32.partialorder %v51, 1.0
    %vm56 = vcmp.gt.f32.partialorder %v54, 1.0
    %v57 = vrsqrt.pop %v51
    %v58 = vrsqrt.pop %v54
    %v59 = vsel %vm55, %v57, 1.0
    %v60 = vsel %vm56, %v58, 1.0
    %v61 = vmul.f32 %v44, %v59
    %v62 = vmul.f32 %v45, %v60
    %v63 = vpack.c.bf16 %v62, %v61
    %v64 = vld [vmem:[#allocation5] sm:$0xff]
    %v65 = vld [vmem:[#allocation5 + $0x8] sm:$0xff]
    %v66 = vld [vmem:[#allocation5 + $0x10] sm:$0xff]
    %v67 = vld [vmem:[#allocation5 + $0x18] sm:$0xff]
    %v68 = vld [vmem:[%s2] sm:$0x3]
    %v70 = vlaneseq
    %v71 = vshrl.u32 %v70, 7
    %v72 = vsub.s32 0, %v71
    %v73 = vrot.slane %v68, %v72
    %v74 = vlaneseq
    %v75 = vshrl.u32 %v74, 7
    %v76 = vsub.s32 1, %v75
    %v77 = vrot.slane %v68, %v76
    %v84 = vunpack.c.l.b16 %v64
    %v85 = vunpack.c.h.b16 %v64
    %v86 = vunpack.c.l.b16 %v65
    %v87 = vunpack.c.h.b16 %v65
    %v88 = vunpack.c.l.b16 %v66
    %v89 = vunpack.c.h.b16 %v66
    %v90 = vunpack.c.l.b16 %v67
    %v91 = vunpack.c.h.b16 %v67
    %v92 = vpack.c.b16 %v86, %v84
    %v93 = vpack.c.b16 %v87, %v85
    %v94 = vpack.c.b16 %v90, %v88
    %v95 = vpack.c.b16 %v91, %v89
    %v101 = vsel %vm48, %v63, 0
    %103 = vmatprep.subr.bf16.mxu0 %v93
    %104 = vmatpush1.bf16.msra.mxu0 %v92
    %105 = vmatprep.subr.bf16.mxu0 %v95
    %106 = vmatpush1.bf16.msra.mxu0 %v94
    %107 = vmatprep.subr.bf16.mxu0 0
    %108 = vmatpush1.bf16.msra.mxu0 0
    %109 = vmatprep.subr.bf16.mxu0 0
    %110 = vmatpush1.bf16.msra.mxu0 0
    %111 = vmatprep.subr.bf16.mxu0 0
    %112 = vmatpush1.bf16.msra.mxu0 0
    %113 = vmatprep.subr.bf16.mxu0 0
    %114 = vmatpush1.bf16.msra.mxu0 0
    %115 = vmatprep.subr.bf16.mxu0 0
    %116 = vmatpush1.bf16.msra.mxu0 0
    %117 = vmatprep.subr.bf16.mxu0 0
    %118 = vmatpush1.bf16.msra.mxu0 0
    %119 = vmatprep.subr.bf16.mxu0 0
    %120 = vmatpush1.bf16.msra.mxu0 0
    %121 = vmatprep.subr.bf16.mxu0 0
    %122 = vmatpush1.bf16.msra.mxu0 0
    %123 = vmatprep.subr.bf16.mxu0 0
    %124 = vmatpush1.bf16.msra.mxu0 0
    %125 = vmatprep.subr.bf16.mxu0 0
    %126 = vmatpush1.bf16.msra.mxu0 0
    %127 = vmatprep.subr.bf16.mxu0 0
    %128 = vmatpush1.bf16.msra.mxu0 0
    %129 = vmatprep.subr.bf16.mxu0 0
    %130 = vmatpush1.bf16.msra.mxu0 0
    %131 = vmatprep.subr.bf16.mxu0 0
    %132 = vmatpush1.bf16.msra.mxu0 0
    %133 = vmatprep.subr.bf16.mxu0 0
    %134 = vmatpush1.bf16.msra.mxu0 0
    %135 = vmatprep.mubr.bf16.mxu0 0
    %136 = vmatmul.mubr.bf16.gmra.mrb[0].mxu0 %v101
    %v137 = vpop.f32.mrb[0].mxu0
    %v138 = vadd.f32 %v73, %v137
    %v139 = vpop.f32.mrb[0].mxu0
    %v140 = vadd.f32 %v77, %v139
    %v141 = vpop.f32.mrb[0].mxu0
    %v142 = vadd.f32 %v73, %v141
    %v143 = vpop.f32.mrb[0].mxu0
    %v144 = vadd.f32 %v77, %v143
    %145 = vdwg.mxu0
    %146 = vst [vmem:[#allocation7] sm:$0xff] %v138
    %147 = vst [vmem:[#allocation7 + $0x8] sm:$0xff] %v140
    %148 = vst [vmem:[#allocation7 + $0x10] sm:$0xff] %v142
    %149 = vst [vmem:[#allocation7 + $0x18] sm:$0xff] %v144
    // Predicated region
    $region22: #{tpu_custom_call.1} parent=1 // pred_check
      _
    $region23: #{tpu_custom_call.1} parent=1 // pred_check_branch
      %151 = sbr.rel (0) target = $region25
    $region24: #{tpu_custom_call.1} parent=1 // pred_region
      %s153 = ssub.s32 512, 512
      %154 = vsyncadd [#allocation4], %s153
      %s155 = sshll.u32 [#allocation7], 4
      %s156 = int_to_ptr.vmem [resolvable:$true] %s155
      %161 = dma.vmem_to_hbm [thread:$0]  %s156, 512, %s3, [#allocation4], 256, 256, 16
    $region25: #{tpu_custom_call.1} parent=1 // pred_fallthru
      _
    // Predicated region
    $region26: #{tpu_custom_call.1} parent=1 // pred_check
      _
    $region27: #{tpu_custom_call.1} parent=1 // pred_check_branch
      %163 = sbr.rel (0) target = $region29
    $region28: #{tpu_custom_call.1} parent=1 // pred_region
      %164 = dma.done [#allocation4], 512
    $region29: #{tpu_custom_call.1} parent=1 // pred_fallthru
      _
    %165 = vsyncpa [#allocation3], 1
    %166 = vsyncpa [#allocation6], 1
    %167 = vsyncpa [#allocation4], 1

</llo_original>
